<compile_context>
chip_gen: v7x
topology: tpu7x:2x2x1
jax: 0.10.0
libtpu: 0.0.40
codegen_flags: <defaults>
</compile_context>

<pallas_src>
import functools

import jax
import jax.numpy as jnp
from jax import lax
from jax.experimental import pallas as pl
from jax.experimental.pallas import tpu as pltpu


def _round_up(x, m):
    return ((x + m - 1) // m) * m


def _chunk_size(tb, max_chunk=512):
    """Largest lane sub-chunk (multiple of 128, <= max_chunk) dividing the tile."""
    c = min(tb, max_chunk)
    while tb % c:
        c -= 128
    return c


def mlp_kernel(xT_ref, w1_ref, b1_ref, w2_ref, b2_ref, w3_ref, b3_ref, o_ref, *, chunk):
    """One batch tile; batch on the lane (last) axis.

    xT_ref : (n_in, TILE_B) f32    input tile (features on sublanes)
    w1_ref : (H1, n_in) f32        b1_ref : (H1, 1) f32
    w2_ref : (H2, H1)  bf16        b2_ref : (H2, 1) f32
    w3_ref : (H2, 1)   f32         b3_ref : (1, 1)  f32
    o_ref  : (1, TILE_B) f32       lane-dense logits for this tile
    """
    n_in = w1_ref.shape[1]
    tile_b = xT_ref.shape[1]
    n_chunks = tile_b // chunk

    # Weights/biases are VMEM-resident across the grid (constant index maps);
    # load once per grid step, hoisted out of the chunk loop.
    w1 = w1_ref[...]
    b1 = b1_ref[...]
    w2 = w2_ref[...]
    b2 = b2_ref[...]
    w3 = w3_ref[...]
    b3 = b3_ref[...]

    # Static, trace-time-unrolled chunk loop (equivalent to
    # lax.fori_loop(..., unroll=True), but every slice offset is a Python int so
    # all loads/stores are aligned static slices). Per-chunk h1/h2 are at most
    # (32, 512) f32 = 16 vregs each, so intermediates stay in registers.
    for c in range(n_chunks):
        lo, hi = c * chunk, (c + 1) * chunk
        xT = xT_ref[:, lo:hi]                                  # (n_in, chunk)

        # ---- Layer 1: K = n_in = 2 -> VPU FMAs in f32 (no MXU pass).
        h1 = b1 + w1[:, 0:1] * xT[0:1, :]
        for j in range(1, n_in):                               # static unroll
            h1 = h1 + w1[:, j:j + 1] * xT[j:j + 1, :]
        h1 = jnp.maximum(h1, 0.0)                              # (H1, chunk) f32

        # ---- Layer 2: bf16 MXU operands, f32 accumulation.
        h2 = jnp.dot(w2, h1.astype(jnp.bfloat16),
                     preferred_element_type=jnp.float32) + b2
        h2 = jnp.maximum(h2, 0.0)                              # (H2, chunk) f32

        # ---- Layer 3: single-logit head -> VPU multiply + XLU sublane-sum
        # (a 1-row MXU pass would waste almost all output rows).
        logits = jnp.sum(w3 * h2, axis=0, keepdims=True) + b3  # (1, chunk)
        o_ref[:, lo:hi] = logits                               # lane-dense store


def prepare_params(params):
    """Hoisted (call-once) padding / layout prep of torch-layout params.

    params: (W1, b1, W2, b2, W3, b3) with W:(out,in), b:(out,).
    Hidden widths sit on the sublane axis -> pad to a multiple of 8 only
    (32 is already aligned, so this is usually a no-op).  w2 is pre-cast to
    bf16 (MXU input); w3 is stored as a column for the VPU+XLU head.
    Zero padding is mathematically inert (ReLU(0)=0, zero weight rows/cols).
    """
    w1, b1, w2, b2, w3, b3 = params
    n_in = w1.shape[1]
    h1, h2 = w1.shape[0], w2.shape[0]
    h1p = _round_up(h1, 8)
    h2p = _round_up(h2, 8)

    w1p = jnp.zeros((h1p, n_in), jnp.float32).at[:h1, :].set(w1)
    b1p = jnp.zeros((h1p, 1), jnp.float32).at[:h1, 0].set(b1)
    w2p = jnp.zeros((h2p, h1p), jnp.float32).at[:h2, :h1].set(w2).astype(jnp.bfloat16)
    b2p = jnp.zeros((h2p, 1), jnp.float32).at[:h2, 0].set(b2)
    w3p = jnp.zeros((h2p, 1), jnp.float32).at[:h2, 0].set(w3[0])
    b3p = b3.reshape(1, 1).astype(jnp.float32)
    return (w1p, b1p, w2p, b2p, w3p, b3p)


def mlp_forward(x, prepared_params, *, tile_b=2048):
    """x: (B, n_in) f32 -> (B,) f32 logits (== torch MLP.forward().squeeze(1)).

    prepared_params: output of prepare_params (padding hoisted out of this path).
    """
    w1p, b1p, w2p, b2p, w3p, b3p = prepared_params
    B, n_in = x.shape
    h1p = w1p.shape[0]
    h2p = w2p.shape[0]

    # Batch tiling: batch on the lane axis, padded to a 128-multiple.
    bp128 = _round_up(B, 128)
    tb = min(_round_up(tile_b, 128), bp128)
    # v7x: keep >= 2 grid steps so the "parallel" batch axis can shard across
    # both TensorCores (harmless on single-TC v5e/v6e).
    if bp128 >= 256 and bp128 // tb < 2:
        tb = _round_up(-(-bp128 // 2), 128)
    bp = _round_up(B, tb)
    chunk = _chunk_size(tb)

    # TODO(synk): if this op ever becomes HBM-bound, fold this pad+transpose into
    # the caller's jit (it is fused here when mlp_forward itself is jitted).
    xT = jnp.zeros((n_in, bp), jnp.float32).at[:, :B].set(x.T)

    resident = lambda shape: pl.BlockSpec(shape, lambda i: (0, 0))

    out = pl.pallas_call(
        functools.partial(mlp_kernel, chunk=chunk),
        out_shape=jax.ShapeDtypeStruct((1, bp), jnp.float32),
        grid=(bp // tb,),
        in_specs=[
            pl.BlockSpec((n_in, tb), lambda i: (0, i)),  # streamed x tile
            resident((h1p, n_in)),                       # weights / biases stay
            resident((h1p, 1)),                          # VMEM-resident across
            resident((h2p, h1p)),                        # the whole grid
            resident((h2p, 1)),
            resident((h2p, 1)),
            resident((1, 1)),
        ],
        out_specs=pl.BlockSpec((1, tb), lambda i: (0, i)),   # lane-dense logits
        compiler_params=pltpu.CompilerParams(
            dimension_semantics=("parallel",),               # 2 TCs on v7x
        ),
    )(xT, w1p, b1p, w2p, b2p, w3p, b3p)

    return out[0, :B]  # drop batch padding; equivalent to torch .squeeze(1)


def init_params(key, n_in, n_h1, n_h2):
    """Deterministic init mimicking torch.nn.Linear default U[-1/sqrt(fan_in), +...]."""
    ks = jax.random.split(key, 6)

    def linear(kw, kb, fan_in, fan_out):
        bound = 1.0 / jnp.sqrt(jnp.float32(fan_in))
        w = jax.random.uniform(kw, (fan_out, fan_in), jnp.float32, -bound, bound)
        b = jax.random.uniform(kb, (fan_out,), jnp.float32, -bound, bound)
        return w, b

    w1, b1 = linear(ks[0], ks[1], n_in, n_h1)
    w2, b2 = linear(ks[2], ks[3], n_h1, n_h2)
    w3, b3 = linear(ks[4], ks[5], n_h2, 1)
    return (w1, b1, w2, b2, w3, b3)


HIGHEST = lax.Precision.HIGHEST


def mlp_reference_f32(x, params):
    """Pure-f32 reference of the torch forward pass."""
    w1, b1, w2, b2, w3, b3 = params
    h = jnp.maximum(jnp.dot(x, w1.T, precision=HIGHEST) + b1, 0.0)
    h = jnp.maximum(jnp.dot(h, w2.T, precision=HIGHEST) + b2, 0.0)
    return (jnp.dot(h, w3.T, precision=HIGHEST) + b3)[:, 0]


def mlp_reference_bf16(x, params):
    """Same forward, but layer 2 uses bf16 operands / f32 accumulation,
    matching the kernel's MXU numerics."""
    w1, b1, w2, b2, w3, b3 = params
    h = jnp.maximum(jnp.dot(x, w1.T, precision=HIGHEST) + b1, 0.0)
    h = jnp.dot(h.astype(jnp.bfloat16), w2.astype(jnp.bfloat16).T,
                preferred_element_type=jnp.float32) + b2
    h = jnp.maximum(h, 0.0)
    return (jnp.dot(h, w3.T, precision=HIGHEST) + b3)[:, 0]


if __name__ == "__main__":
    # Module-implied shapes: n_in=2, n_hidden1=32, n_hidden2=32, scalar logit.
    B, N_IN, N_H1, N_H2 = 300, 2, 32, 32

    key = jax.random.PRNGKey(0)
    kx, kx2, kp = jax.random.split(key, 3)
    x = jax.random.normal(kx, (B, N_IN), dtype=jnp.float32)
    params = init_params(kp, N_IN, N_H1, N_H2)
    prepared = prepare_params(params)          # hoisted, call-once param prep

    fwd = jax.jit(mlp_forward, static_argnames=("tile_b",))

    # (1) Tiny tile -> exercises the multi-step grid (3 steps, B=300 not tile-aligned).
    logits_small = fwd(x, prepared, tile_b=128)
    # (2) Default tile -> exercises the >=2-step split kept for v7x megacore.
    logits_default = fwd(x, prepared)
    # (3) Larger batch -> exercises the in-kernel lane-chunk loop (n_chunks > 1).
    B2 = 2560
    x2 = jax.random.normal(kx2, (B2, N_IN), dtype=jnp.float32)
    logits_big = fwd(x2, prepared)
    jax.block_until_ready((logits_small, logits_default, logits_big))

    checks = [
        (logits_small, x, B),
        (logits_default, x, B),
        (logits_big, x2, B2),
    ]
    for out, xin, b in checks:
        assert out.shape == (b,)
        ref_bf16 = mlp_reference_bf16(xin, params)   # kernel MXU numerics
        ref_f32 = mlp_reference_f32(xin, params)     # pure-f32 torch semantics
        assert jnp.allclose(out, ref_bf16, atol=2e-3, rtol=2e-3), \
            float(jnp.max(jnp.abs(out - ref_bf16)))
        assert jnp.allclose(out, ref_f32, atol=1e-1, rtol=1e-1), \
            float(jnp.max(jnp.abs(out - ref_f32)))

    print("KERNEL_OK")
</pallas_src>

<mosaic_0001>
module attributes {stable_mosaic.version = 11 : i64} {
  func.func @mlp_kernel(%arg0: i32, %arg1: memref<2x128xf32, #tpu.memory_space<vmem>>, %arg2: memref<32x2xf32, #tpu.memory_space<vmem>>, %arg3: memref<32x1xf32, #tpu.memory_space<vmem>>, %arg4: memref<32x32xbf16, #tpu.memory_space<vmem>>, %arg5: memref<32x1xf32, #tpu.memory_space<vmem>>, %arg6: memref<32x1xf32, #tpu.memory_space<vmem>>, %arg7: memref<1x1xf32, #tpu.memory_space<vmem>>, %arg8: memref<1x128xf32, #tpu.memory_space<vmem>>) attributes {dimension_semantics = [#tpu.dimension_semantics<parallel>], iteration_bounds = array<i64: 3>, scalar_prefetch = 0 : i64, scratch_operands = 0 : i64, tpu.core_type = #tpu.core_type<tc>, window_params = [{transform_indices = @transform_0, window_bounds = array<i64: 2, 128>}, {pipeline_mode = #tpu.pipeline_mode<synchronous>, transform_indices = @transform_1, window_bounds = array<i64: 32, 2>}, {pipeline_mode = #tpu.pipeline_mode<synchronous>, transform_indices = @transform_2, window_bounds = array<i64: 32, 1>}, {pipeline_mode = #tpu.pipeline_mode<synchronous>, transform_indices = @transform_3, window_bounds = array<i64: 32, 32>}, {pipeline_mode = #tpu.pipeline_mode<synchronous>, transform_indices = @transform_4, window_bounds = array<i64: 32, 1>}, {pipeline_mode = #tpu.pipeline_mode<synchronous>, transform_indices = @transform_5, window_bounds = array<i64: 32, 1>}, {pipeline_mode = #tpu.pipeline_mode<synchronous>, transform_indices = @transform_6, window_bounds = array<i64: 1, 1>}, {transform_indices = @transform_7, window_bounds = array<i64: 1, 128>}]} {
    %c0 = arith.constant 0 : index
    %c0_0 = arith.constant 0 : index
    %0 = vector.load %arg2[%c0, %c0_0] : memref<32x2xf32, #tpu.memory_space<vmem>>, vector<32x2xf32>
    %c0_1 = arith.constant 0 : index
    %c0_2 = arith.constant 0 : index
    %1 = vector.load %arg3[%c0_1, %c0_2] : memref<32x1xf32, #tpu.memory_space<vmem>>, vector<32x1xf32>
    %c0_3 = arith.constant 0 : index
    %c0_4 = arith.constant 0 : index
    %2 = vector.load %arg4[%c0_3, %c0_4] : memref<32x32xbf16, #tpu.memory_space<vmem>>, vector<32x32xbf16>
    %c0_5 = arith.constant 0 : index
    %c0_6 = arith.constant 0 : index
    %3 = vector.load %arg5[%c0_5, %c0_6] : memref<32x1xf32, #tpu.memory_space<vmem>>, vector<32x1xf32>
    %c0_7 = arith.constant 0 : index
    %c0_8 = arith.constant 0 : index
    %4 = vector.load %arg6[%c0_7, %c0_8] : memref<32x1xf32, #tpu.memory_space<vmem>>, vector<32x1xf32>
    %c0_9 = arith.constant 0 : index
    %c0_10 = arith.constant 0 : index
    %5 = vector.load %arg7[%c0_9, %c0_10] : memref<1x1xf32, #tpu.memory_space<vmem>>, vector<1x1xf32>
    %c0_11 = arith.constant 0 : index
    %c0_12 = arith.constant 0 : index
    %6 = vector.load %arg1[%c0_11, %c0_12] : memref<2x128xf32, #tpu.memory_space<vmem>>, vector<2x128xf32>
    %7 = vector.extract_strided_slice %0 {offsets = [0, 0], sizes = [32, 1], strides = [1, 1]} : vector<32x2xf32> to vector<32x1xf32>
    %8 = vector.extract_strided_slice %6 {offsets = [0, 0], sizes = [1, 128], strides = [1, 1]} : vector<2x128xf32> to vector<1x128xf32>
    %9 = vector.broadcast %7 : vector<32x1xf32> to vector<32x128xf32>
    %10 = vector.broadcast %8 : vector<1x128xf32> to vector<32x128xf32>
    %11 = arith.mulf %9, %10 : vector<32x128xf32>
    %12 = vector.broadcast %1 : vector<32x1xf32> to vector<32x128xf32>
    %13 = arith.addf %12, %11 : vector<32x128xf32>
    %14 = vector.extract_strided_slice %0 {offsets = [0, 1], sizes = [32, 1], strides = [1, 1]} : vector<32x2xf32> to vector<32x1xf32>
    %15 = vector.extract_strided_slice %6 {offsets = [1, 0], sizes = [1, 128], strides = [1, 1]} : vector<2x128xf32> to vector<1x128xf32>
    %16 = vector.broadcast %14 : vector<32x1xf32> to vector<32x128xf32>
    %17 = vector.broadcast %15 : vector<1x128xf32> to vector<32x128xf32>
    %18 = arith.mulf %16, %17 : vector<32x128xf32>
    %19 = arith.addf %13, %18 : vector<32x128xf32>
    %cst = arith.constant 0.000000e+00 : f32
    %20 = vector.broadcast %cst : f32 to vector<32x128xf32>
    %21 = arith.maximumf %19, %20 : vector<32x128xf32>
    %22 = arith.truncf %21 : vector<32x128xf32> to vector<32x128xbf16>
    %cst_13 = arith.constant dense<0.000000e+00> : vector<32x128xf32>
    %23 = tpu.matmul %2, %22, %cst_13 {dimension_numbers = #tpu.dot_dimension_numbers<[1], [0], [0], [1], [0, 0, 1, 1], [], []>} : vector<32x32xbf16>, vector<32x128xbf16>, vector<32x128xf32> -> vector<32x128xf32>
    %24 = vector.broadcast %3 : vector<32x1xf32> to vector<32x128xf32>
    %25 = arith.addf %23, %24 : vector<32x128xf32>
    %cst_14 = arith.constant 0.000000e+00 : f32
    %26 = vector.broadcast %cst_14 : f32 to vector<32x128xf32>
    %27 = arith.maximumf %25, %26 : vector<32x128xf32>
    %28 = vector.broadcast %4 : vector<32x1xf32> to vector<32x128xf32>
    %29 = arith.mulf %28, %27 : vector<32x128xf32>
    %cst_15 = arith.constant dense<0.000000e+00> : vector<128xf32>
    %30 = vector.multi_reduction <add>, %29, %cst_15 [0] : vector<32x128xf32> to vector<128xf32>
    %31 = vector.shape_cast %30 : vector<128xf32> to vector<1x128xf32>
    %32 = vector.broadcast %5 : vector<1x1xf32> to vector<1x128xf32>
    %33 = arith.addf %31, %32 : vector<1x128xf32>
    %c0_16 = arith.constant 0 : index
    %c0_17 = arith.constant 0 : index
    %34 = vector.load %arg8[%c0_16, %c0_17] : memref<1x128xf32, #tpu.memory_space<vmem>>, vector<1x128xf32>
    tpu.vector_store %arg8[%c0_16, %c0_17], %33 {strides = array<i32>} : memref<1x128xf32, #tpu.memory_space<vmem>>, vector<1x128xf32>,
    return
  }
  func.func @transform_0(%arg0: i32) -> (i32, i32) {
    %c0_i32 = arith.constant 0 : i32
    %c0_i32_0 = arith.constant 0 : i32
    return %c0_i32, %arg0 : i32, i32
  }
  func.func @transform_1(%arg0: i32) -> (i32, i32) {
    %c0_i32 = arith.constant 0 : i32
    %c0_i32_0 = arith.constant 0 : i32
    %c0_i32_1 = arith.constant 0 : i32
    return %c0_i32, %c0_i32_0 : i32, i32
  }
  func.func @transform_2(%arg0: i32) -> (i32, i32) {
    %c0_i32 = arith.constant 0 : i32
    %c0_i32_0 = arith.constant 0 : i32
    %c0_i32_1 = arith.constant 0 : i32
    return %c0_i32, %c0_i32_0 : i32, i32
  }
  func.func @transform_3(%arg0: i32) -> (i32, i32) {
    %c0_i32 = arith.constant 0 : i32
    %c0_i32_0 = arith.constant 0 : i32
    %c0_i32_1 = arith.constant 0 : i32
    return %c0_i32, %c0_i32_0 : i32, i32
  }
  func.func @transform_4(%arg0: i32) -> (i32, i32) {
    %c0_i32 = arith.constant 0 : i32
    %c0_i32_0 = arith.constant 0 : i32
    %c0_i32_1 = arith.constant 0 : i32
    return %c0_i32, %c0_i32_0 : i32, i32
  }
  func.func @transform_5(%arg0: i32) -> (i32, i32) {
    %c0_i32 = arith.constant 0 : i32
    %c0_i32_0 = arith.constant 0 : i32
    %c0_i32_1 = arith.constant 0 : i32
    return %c0_i32, %c0_i32_0 : i32, i32
  }
  func.func @transform_6(%arg0: i32) -> (i32, i32) {
    %c0_i32 = arith.constant 0 : i32
    %c0_i32_0 = arith.constant 0 : i32
    %c0_i32_1 = arith.constant 0 : i32
    return %c0_i32, %c0_i32_0 : i32, i32
  }
  func.func @transform_7(%arg0: i32) -> (i32, i32) {
    %c0_i32 = arith.constant 0 : i32
    %c0_i32_0 = arith.constant 0 : i32
    return %c0_i32, %arg0 : i32, i32
  }
}

</mosaic_0001>

<llo_original>
// kernel: mlp_forward.1
$region0: #{mlp_forward.1}
  #allocation0 [shape = 'u32[]', space=smem, size = 0x4, offset = 0x4, fixed_abs, tag = 'smem constant byte address 0x4 - core index']
  #allocation1 [shape = 'u32[144,128]{1,0:T(1,128)}', space=vmem, size = 0x12000, scoped, tag = 'internal scratch']
  #allocation2 [shape = 'f32[1,1]{1,0:T(1,128)S(1)}', space=vmem, size = 0x200, scoped, tag = 'scoped memory for mlp_forward.1']
  %s0 = inlined_call_operand.vmem [shape: f32[2,384], index: 0, kind: input, shape index: {}]
  %s1 = inlined_call_operand.vmem [shape: f32[32,2], index: 1, kind: input, shape index: {}]
  %s2 = inlined_call_operand.vmem [shape: f32[32,1], index: 2, kind: input, shape index: {}]
  %s3 = inlined_call_operand.vmem [shape: bf16[32,32], index: 3, kind: input, shape index: {}]
  %s4 = inlined_call_operand.vmem [shape: f32[32,1], index: 4, kind: input, shape index: {}]
  %s5 = inlined_call_operand.vmem [shape: f32[32,1], index: 5, kind: input, shape index: {}]
  %s6 = inlined_call_operand.<no memory space> [shape: f32[1,1], index: 6, kind: input, shape index: {}]
  %s7 = inlined_call_operand.vmem [shape: f32[1,384], index: 7, kind: output, shape index: {}]
  %s8 = sld [smem:[#allocation0]]
  $region61: #{mlp_forward.1} parent=0
    _
  %s10 = ssub.s32 1, %s8
  %s11 = scalar_select 0, %s10, %s8
  %v12 = vstv %s6
  %13 = vst [vmem:[#allocation2] sm:$0x1] %v12
  loop: start=0, step=1, limit=5
  $region2: #{mlp_forward.1} parent=0 // loop_pre_header
    _
  $region3: #{mlp_forward.1} parent=0 // loop_header
    %s15 = sphi 0, %s19
    %p16 = scmp.ge.s32.totalorder %s15, 5
    %s25 = sphi 0, %s27
    %s28 = sphi 0, %s25
    %s29 = sphi 0, %s28
    %s45 = sphi 0, %s29
    %s49 = sphi 0, %s49
    %s51 = sphi 0, %s49
    %s52 = sphi 0, %s51
    %s66 = sphi 0, %s52
    %s70 = sphi 0, %s70
    %s72 = sphi 0, %s70
    %s73 = sphi 0, %s72
    %s87 = sphi 0, %s73
    %s91 = sphi 0, %s91
    %s93 = sphi 0, %s91
    %s94 = sphi 0, %s93
    %s108 = sphi 0, %s94
    %s112 = sphi 0, %s112
    %s114 = sphi 0, %s112
    %s115 = sphi 0, %s114
    %s129 = sphi 0, %s115
    %s133 = sphi 0, %s133
    %s135 = sphi 0, %s133
    %s136 = sphi 0, %s135
    %s150 = sphi 0, %s136
    %s154 = sphi 0, %s154
    %s156 = sphi 0, %s154
    %s157 = sphi 0, %s156
    %s171 = sphi 0, %s157
    %s177 = sphi 0, %s179
    %s180 = sphi 0, %s177
    %s181 = sphi 0, %s180
    %s197 = sphi 0, %s181
  $region4: #{mlp_forward.1} parent=0 // loop_header_branch
    %18 = sbr.rel (%p16) target = $region8
  $region5: #{mlp_forward.1} parent=0 // loop_body
    %s20 = ssub.s32 %s15, 1
    %s21 = ssub.s32 %s15, 2
    %s22 = sadd.s32 %s15, 1
    %s23 = ssub.s32 %s15, %s22
    %p24 = scmp.eq.s32.totalorder %s23, 0
    %s26 = sadd.s32 %s25, 1
    %s27 = scalar_select %p24, %s25, %s26
    %p30 = pneg %p24
    %p31 = scmp.eq.s32.totalorder %s15, 2
    %p32 = por %p30, %p31
    %p33 = scmp.ne.s32.totalorder %s25, %s28
    %p34 = scmp.eq.s32.totalorder %s15, 0
    %p35 = por %p33, %p34
    %p36 = scmp.ne.s32.totalorder %s25, %s28
    %p37 = scmp.eq.s32.totalorder %s20, 2
    %p38 = por %p36, %p37
    %p39 = scmp.ne.s32.totalorder %s28, %s29
    %p40 = scmp.eq.s32.totalorder %s20, 0
    %p41 = por %p39, %p40
    %p42 = scmp.ne.s32.totalorder %s28, %s29
    %p43 = scmp.eq.s32.totalorder %s21, 2
    %p44 = por %p42, %p43
    %p46 = scmp.ne.s32.totalorder %s29, %s45
    %p47 = scmp.eq.s32.totalorder %s21, 0
    %p48 = por %p46, %p47
    %s50 = sadd.s32 %s49, 1
    %p53 = scmp.eq.s32.totalorder %s15, 2
    %p54 = scmp.ne.s32.totalorder %s49, %s51
    %p55 = scmp.eq.s32.totalorder %s15, 0
    %p56 = por %p54, %p55
    %p57 = scmp.ne.s32.totalorder %s49, %s51
    %p58 = scmp.eq.s32.totalorder %s20, 2
    %p59 = por %p57, %p58
    %p60 = scmp.ne.s32.totalorder %s51, %s52
    %p61 = scmp.eq.s32.totalorder %s20, 0
    %p62 = por %p60, %p61
    %p63 = scmp.ne.s32.totalorder %s51, %s52
    %p64 = scmp.eq.s32.totalorder %s21, 2
    %p65 = por %p63, %p64
    %p67 = scmp.ne.s32.totalorder %s52, %s66
    %p68 = scmp.eq.s32.totalorder %s21, 0
    %p69 = por %p67, %p68
    %s71 = sadd.s32 %s70, 1
    %p74 = scmp.eq.s32.totalorder %s15, 2
    %p75 = scmp.ne.s32.totalorder %s70, %s72
    %p76 = scmp.eq.s32.totalorder %s15, 0
    %p77 = por %p75, %p76
    %p78 = scmp.ne.s32.totalorder %s70, %s72
    %p79 = scmp.eq.s32.totalorder %s20, 2
    %p80 = por %p78, %p79
    %p81 = scmp.ne.s32.totalorder %s72, %s73
    %p82 = scmp.eq.s32.totalorder %s20, 0
    %p83 = por %p81, %p82
    %p84 = scmp.ne.s32.totalorder %s72, %s73
    %p85 = scmp.eq.s32.totalorder %s21, 2
    %p86 = por %p84, %p85
    %p88 = scmp.ne.s32.totalorder %s73, %s87
    %p89 = scmp.eq.s32.totalorder %s21, 0
    %p90 = por %p88, %p89
    %s92 = sadd.s32 %s91, 1
    %p95 = scmp.eq.s32.totalorder %s15, 2
    %p96 = scmp.ne.s32.totalorder %s91, %s93
    %p97 = scmp.eq.s32.totalorder %s15, 0
    %p98 = por %p96, %p97
    %p99 = scmp.ne.s32.totalorder %s91, %s93
    %p100 = scmp.eq.s32.totalorder %s20, 2
    %p101 = por %p99, %p100
    %p102 = scmp.ne.s32.totalorder %s93, %s94
    %p103 = scmp.eq.s32.totalorder %s20, 0
    %p104 = por %p102, %p103
    %p105 = scmp.ne.s32.totalorder %s93, %s94
    %p106 = scmp.eq.s32.totalorder %s21, 2
    %p107 = por %p105, %p106
    %p109 = scmp.ne.s32.totalorder %s94, %s108
    %p110 = scmp.eq.s32.totalorder %s21, 0
    %p111 = por %p109, %p110
    %s113 = sadd.s32 %s112, 1
    %p116 = scmp.eq.s32.totalorder %s15, 2
    %p117 = scmp.ne.s32.totalorder %s112, %s114
    %p118 = scmp.eq.s32.totalorder %s15, 0
    %p119 = por %p117, %p118
    %p120 = scmp.ne.s32.totalorder %s112, %s114
    %p121 = scmp.eq.s32.totalorder %s20, 2
    %p122 = por %p120, %p121
    %p123 = scmp.ne.s32.totalorder %s114, %s115
    %p124 = scmp.eq.s32.totalorder %s20, 0
    %p125 = por %p123, %p124
    %p126 = scmp.ne.s32.totalorder %s114, %s115
    %p127 = scmp.eq.s32.totalorder %s21, 2
    %p128 = por %p126, %p127
    %p130 = scmp.ne.s32.totalorder %s115, %s129
    %p131 = scmp.eq.s32.totalorder %s21, 0
    %p132 = por %p130, %p131
    %s134 = sadd.s32 %s133, 1
    %p137 = scmp.eq.s32.totalorder %s15, 2
    %p138 = scmp.ne.s32.totalorder %s133, %s135
    %p139 = scmp.eq.s32.totalorder %s15, 0
    %p140 = por %p138, %p139
    %p141 = scmp.ne.s32.totalorder %s133, %s135
    %p142 = scmp.eq.s32.totalorder %s20, 2
    %p143 = por %p141, %p142
    %p144 = scmp.ne.s32.totalorder %s135, %s136
    %p145 = scmp.eq.s32.totalorder %s20, 0
    %p146 = por %p144, %p145
    %p147 = scmp.ne.s32.totalorder %s135, %s136
    %p148 = scmp.eq.s32.totalorder %s21, 2
    %p149 = por %p147, %p148
    %p151 = scmp.ne.s32.totalorder %s136, %s150
    %p152 = scmp.eq.s32.totalorder %s21, 0
    %p153 = por %p151, %p152
    %s155 = sadd.s32 %s154, 1
    %p158 = scmp.eq.s32.totalorder %s15, 2
    %p159 = scmp.ne.s32.totalorder %s154, %s156
    %p160 = scmp.eq.s32.totalorder %s15, 0
    %p161 = por %p159, %p160
    %p162 = scmp.ne.s32.totalorder %s154, %s156
    %p163 = scmp.eq.s32.totalorder %s20, 2
    %p164 = por %p162, %p163
    %p165 = scmp.ne.s32.totalorder %s156, %s157
    %p166 = scmp.eq.s32.totalorder %s20, 0
    %p167 = por %p165, %p166
    %p168 = scmp.ne.s32.totalorder %s156, %s157
    %p169 = scmp.eq.s32.totalorder %s21, 2
    %p170 = por %p168, %p169
    %p172 = scmp.ne.s32.totalorder %s157, %s171
    %p173 = scmp.eq.s32.totalorder %s21, 0
    %p174 = por %p172, %p173
    %s175 = ssub.s32 %s15, %s22
    %p176 = scmp.eq.s32.totalorder %s175, 0
    %s178 = sadd.s32 %s177, 1
    %s179 = scalar_select %p176, %s177, %s178
    %p182 = pneg %p176
    %p183 = scmp.eq.s32.totalorder %s15, 2
    %p184 = por %p182, %p183
    %p185 = scmp.ne.s32.totalorder %s177, %s180
    %p186 = scmp.eq.s32.totalorder %s15, 0
    %p187 = por %p185, %p186
    %p188 = scmp.ne.s32.totalorder %s177, %s180
    %p189 = scmp.eq.s32.totalorder %s20, 2
    %p190 = por %p188, %p189
    %p191 = scmp.ne.s32.totalorder %s180, %s181
    %p192 = scmp.eq.s32.totalorder %s20, 0
    %p193 = por %p191, %p192
    %p194 = scmp.ne.s32.totalorder %s180, %s181
    %p195 = scmp.eq.s32.totalorder %s21, 2
    %p196 = por %p194, %p195
    %p198 = scmp.ne.s32.totalorder %s181, %s197
    %p199 = scmp.eq.s32.totalorder %s21, 0
    %p200 = por %p198, %p199
    %p201 = scmp.le.s32.totalorder 1, %s15
    %p202 = scmp.lt.s32.totalorder %s15, 4
    %p203 = pnand %p201, %p202
    %p204 = pneg %p203
    // Predicated region
    $region9: #{mlp_forward.1} parent=5 // pred_check
      _
    $region10: #{mlp_forward.1} parent=5 // pred_check_branch
      %206 = sbr.rel (%p203) target = $region12
    $region11: #{mlp_forward.1} parent=5 // pred_region
      %s207 = ssub.s32 %s15, 1
      // Predicated region
      $region13: #{mlp_forward.1} parent=11 // pred_check
        %p208 = pneg %p62
      $region14: #{mlp_forward.1} parent=11 // pred_check_branch
        %210 = sbr.rel (%p208) target = $region16
      $region15: #{mlp_forward.1} parent=11 // pred_region
        _
      $region16: #{mlp_forward.1} parent=11 // pred_fallthru
        _
      // Predicated region
      $region17: #{mlp_forward.1} parent=11 // pred_check
        %p211 = pneg %p83
      $region18: #{mlp_forward.1} parent=11 // pred_check_branch
        %213 = sbr.rel (%p211) target = $region20
      $region19: #{mlp_forward.1} parent=11 // pred_region
        _
      $region20: #{mlp_forward.1} parent=11 // pred_fallthru
        _
      // Predicated region
      $region21: #{mlp_forward.1} parent=11 // pred_check
        %p214 = pneg %p104
      $region22: #{mlp_forward.1} parent=11 // pred_check_branch
        %216 = sbr.rel (%p214) target = $region24
      $region23: #{mlp_forward.1} parent=11 // pred_region
        _
      $region24: #{mlp_forward.1} parent=11 // pred_fallthru
        _
      // Predicated region
      $region25: #{mlp_forward.1} parent=11 // pred_check
        %p217 = pneg %p125
      $region26: #{mlp_forward.1} parent=11 // pred_check_branch
        %219 = sbr.rel (%p217) target = $region28
      $region27: #{mlp_forward.1} parent=11 // pred_region
        _
      $region28: #{mlp_forward.1} parent=11 // pred_fallthru
        _
      // Predicated region
      $region29: #{mlp_forward.1} parent=11 // pred_check
        %p220 = pneg %p146
      $region30: #{mlp_forward.1} parent=11 // pred_check_branch
        %222 = sbr.rel (%p220) target = $region32
      $region31: #{mlp_forward.1} parent=11 // pred_region
        _
      $region32: #{mlp_forward.1} parent=11 // pred_fallthru
        _
      // Predicated region
      $region33: #{mlp_forward.1} parent=11 // pred_check
        %p223 = pneg %p167
      $region34: #{mlp_forward.1} parent=11 // pred_check_branch
        %225 = sbr.rel (%p223) target = $region36
      $region35: #{mlp_forward.1} parent=11 // pred_region
        _
      $region36: #{mlp_forward.1} parent=11 // pred_fallthru
        _
    $region12: #{mlp_forward.1} parent=5 // pred_fallthru
      _
    %p226 = scmp.lt.s32.totalorder %s15, 3
    // Predicated region
    $region37: #{mlp_forward.1} parent=5 // pred_check
      %p227 = pneg %p226
    $region38: #{mlp_forward.1} parent=5 // pred_check_branch
      %229 = sbr.rel (%p227) target = $region40
    $region39: #{mlp_forward.1} parent=5 // pred_region
      // Predicated region
      $region41: #{mlp_forward.1} parent=39 // pred_check
        %p230 = pneg %p35
      $region42: #{mlp_forward.1} parent=39 // pred_check_branch
        %232 = sbr.rel (%p230) target = $region44
      $region43: #{mlp_forward.1} parent=39 // pred_region
        %p233 = scmp.lt.s32.totalorder %s15, 2
        %s234 = scalar_select %p233, %s15, 2
        %s235 = smul.addr %s234, 2
        %s236 = scalar_lea.vmem %s0, %s235
      $region44: #{mlp_forward.1} parent=39 // pred_fallthru
        _
    $region40: #{mlp_forward.1} parent=5 // pred_fallthru
      _
    %p237 = scmp.le.s32.totalorder 1, %s15
    %p238 = scmp.lt.s32.totalorder %s15, 4
    %p239 = pnand %p237, %p238
    %p240 = pneg %p239
    // Predicated region
    $region45: #{mlp_forward.1} parent=5 // pred_check
      _
    $region46: #{mlp_forward.1} parent=5 // pred_check_branch
      %242 = sbr.rel (%p239) target = $region48
    $region47: #{mlp_forward.1} parent=5 // pred_region
      %s243 = ssub.s32 %s15, 1
      %p244 = scmp.lt.s32.totalorder %s20, 2
      %s245 = scalar_select %p244, %s20, 2
      %s246 = smul.addr %s245, 2
      %s247 = scalar_lea.vmem %s0, %s246
      %p248 = pneg %p41
      %p249 = pneg %p38
      %p250 = pneg %p62
      %p251 = pneg %p59
      %p252 = pneg %p83
      %p253 = pneg %p80
      %p254 = pneg %p104
      %p255 = pneg %p101
      %p256 = pneg %p125
      %p257 = pneg %p122
      %p258 = pneg %p146
      %p259 = pneg %p143
      %p260 = pneg %p167
      %p261 = pneg %p164
      %p262 = pneg %p193
      %p263 = pneg %p190
      %p264 = scmp.lt.s32.totalorder %s20, 2
      %s265 = scalar_select %p264, %s20, 2
      %s266 = scalar_lea.vmem %s7, %s265
      %p267 = scmp.lt.s32.totalorder %s20, 2
      %s268 = scalar_select %p267, %s20, 2
      %s269 = smul.addr %s268, 2
      %s270 = scalar_lea.vmem %s0, %s269
      %p271 = scmp.lt.s32.totalorder %s20, 2
      %s272 = scalar_select %p271, %s20, 2
      %s273 = scalar_lea.vmem %s7, %s272
      %v275 = vld [vmem:[%s1] sm:$0xff]
      %v276 = vld [vmem:[%s1 + $0x8] sm:$0xff]
      %v277 = vld [vmem:[%s1 + $0x10] sm:$0xff]
      %v278 = vld [vmem:[%s1 + $0x18] sm:$0xff]
      %v279 = vld [vmem:[%s2] sm:$0xff]
      %v280 = vld [vmem:[%s2 + $0x8] sm:$0xff]
      %v281 = vld [vmem:[%s2 + $0x10] sm:$0xff]
      %v282 = vld [vmem:[%s2 + $0x18] sm:$0xff]
      %v283 = vld [vmem:[%s3] sm:$0xf]
      %v284 = vld [vmem:[%s3 + $0x4] sm:$0xf]
      %v285 = vld [vmem:[%s3 + $0x8] sm:$0xf]
      %v286 = vld [vmem:[%s3 + $0xc] sm:$0xf]
      %v287 = vld [vmem:[%s4] sm:$0xff]
      %v288 = vld [vmem:[%s4 + $0x8] sm:$0xff]
      %v289 = vld [vmem:[%s4 + $0x10] sm:$0xff]
      %v290 = vld [vmem:[%s4 + $0x18] sm:$0xff]
      %v291 = vld [vmem:[%s5] sm:$0xff]
      %v292 = vld [vmem:[%s5 + $0x8] sm:$0xff]
      %v293 = vld [vmem:[%s5 + $0x10] sm:$0xff]
      %v294 = vld [vmem:[%s5 + $0x18] sm:$0xff]
      %v295 = vld [vmem:[#allocation2] sm:$0x1]
      %v296 = vld [vmem:[%s270] sm:$0x3]
      %298 = vset.pattern.permute.xlu0 0
      %299 = vperm.xlu0 %298, %v275
      %v300 = vpop.permute.xlu0 %299
      %303 = vset.pattern.permute.xlu0 0
      %304 = vperm.xlu0 %303, %v276
      %v305 = vpop.permute.xlu0 %304
      %308 = vset.pattern.permute.xlu0 0
      %309 = vperm.xlu0 %308, %v277
      %v310 = vpop.permute.xlu0 %309
      %313 = vset.pattern.permute.xlu0 0
      %314 = vperm.xlu0 %313, %v278
      %v315 = vpop.permute.xlu0 %314
      %v317 = vlaneseq
      %v318 = vshrl.u32 %v317, 7
      %v319 = vsub.s32 0, %v318
      %v320 = vrot.slane %v296, %v319
      %v321 = vmul.f32 %v300, %v320
      %v322 = vmul.f32 %v305, %v320
      %v323 = vmul.f32 %v310, %v320
      %v324 = vmul.f32 %v315, %v320
      %326 = vset.pattern.permute.xlu0 0
      %327 = vperm.xlu0 %326, %v279
      %v328 = vpop.permute.xlu0 %327
      %331 = vset.pattern.permute.xlu0 0
      %332 = vperm.xlu0 %331, %v280
      %v333 = vpop.permute.xlu0 %332
      %336 = vset.pattern.permute.xlu0 0
      %337 = vperm.xlu0 %336, %v281
      %v338 = vpop.permute.xlu0 %337
      %341 = vset.pattern.permute.xlu0 0
      %342 = vperm.xlu0 %341, %v282
      %v343 = vpop.permute.xlu0 %342
      %v345 = vadd.f32 %v328, %v321
      %v346 = vadd.f32 %v333, %v322
      %v347 = vadd.f32 %v338, %v323
      %v348 = vadd.f32 %v343, %v324
      %349 = vset.pattern.permute.xlu0 1
      %350 = vperm.xlu0 %349, %v275
      %v351 = vpop.permute.xlu0 %350
      %353 = vset.pattern.permute.xlu0 1
      %354 = vperm.xlu0 %353, %v276
      %v355 = vpop.permute.xlu0 %354
      %357 = vset.pattern.permute.xlu0 1
      %358 = vperm.xlu0 %357, %v277
      %v359 = vpop.permute.xlu0 %358
      %361 = vset.pattern.permute.xlu0 1
      %362 = vperm.xlu0 %361, %v278
      %v363 = vpop.permute.xlu0 %362
      %v365 = vlaneseq
      %v366 = vshrl.u32 %v365, 7
      %v367 = vsub.s32 1, %v366
      %v368 = vrot.slane %v296, %v367
      %v369 = vmul.f32 %v351, %v368
      %v370 = vmul.f32 %v355, %v368
      %v371 = vmul.f32 %v359, %v368
      %v372 = vmul.f32 %v363, %v368
      %v373 = vadd.f32 %v345, %v369
      %v374 = vadd.f32 %v346, %v370
      %v375 = vadd.f32 %v347, %v371
      %v376 = vadd.f32 %v348, %v372
      %v377 = vmax.f32 %v373, 0.0
      %v378 = vmax.f32 %v374, 0.0
      %v379 = vmax.f32 %v375, 0.0
      %v380 = vmax.f32 %v376, 0.0
      %v381 = vpack.c.bf16 %v378, %v377
      %v382 = vpack.c.bf16 %v380, %v379
      %384 = vset.pattern.permute.xlu0 0
      %385 = vperm.xlu0 %384, %v287
      %v386 = vpop.permute.xlu0 %385
      %389 = vset.pattern.permute.xlu0 0
      %390 = vperm.xlu0 %389, %v288
      %v391 = vpop.permute.xlu0 %390
      %394 = vset.pattern.permute.xlu0 0
      %395 = vperm.xlu0 %394, %v289
      %v396 = vpop.permute.xlu0 %395
      %399 = vset.pattern.permute.xlu0 0
      %400 = vperm.xlu0 %399, %v290
      %v401 = vpop.permute.xlu0 %400
      %v407 = vunpack.c.l.b16 %v283
      %v408 = vunpack.c.l.b16 %v284
      %v409 = vunpack.c.l.b16 %v285
      %v410 = vunpack.c.l.b16 %v286
      %v411 = vpack.c.b16 %v408, %v407
      %v412 = vpack.c.b16 %v410, %v409
      %vm413 = vcmask 261120
      %v415 = vsel %vm413, %v411, 0
      %v418 = vsel %vm413, %v412, 0
      %420 = vmatprep.subr.bf16.mxu0 0
      %421 = vmatpush1.bf16.msra.mxu0 %v381
      %422 = vmatprep.subr.bf16.mxu0 0
      %423 = vmatpush1.bf16.msra.mxu0 %v382
      %424 = vmatprep.subr.bf16.mxu0 0
      %425 = vmatpush1.bf16.msra.mxu0 0
      %426 = vmatprep.subr.bf16.mxu0 0
      %427 = vmatpush1.bf16.msra.mxu0 0
      %428 = vmatprep.subr.bf16.mxu0 0
      %429 = vmatpush1.bf16.msra.mxu0 0
      %430 = vmatprep.subr.bf16.mxu0 0
      %431 = vmatpush1.bf16.msra.mxu0 0
      %432 = vmatprep.subr.bf16.mxu0 0
      %433 = vmatpush1.bf16.msra.mxu0 0
      %434 = vmatprep.subr.bf16.mxu0 0
      %435 = vmatpush1.bf16.msra.mxu0 0
      %436 = vmatprep.subr.bf16.mxu0 0
      %437 = vmatpush1.bf16.msra.mxu0 0
      %438 = vmatprep.subr.bf16.mxu0 0
      %439 = vmatpush1.bf16.msra.mxu0 0
      %440 = vmatprep.subr.bf16.mxu0 0
      %441 = vmatpush1.bf16.msra.mxu0 0
      %442 = vmatprep.subr.bf16.mxu0 0
      %443 = vmatpush1.bf16.msra.mxu0 0
      %444 = vmatprep.subr.bf16.mxu0 0
      %445 = vmatpush1.bf16.msra.mxu0 0
      %446 = vmatprep.subr.bf16.mxu0 0
      %447 = vmatpush1.bf16.msra.mxu0 0
      %448 = vmatprep.subr.bf16.mxu0 0
      %449 = vmatpush1.bf16.msra.mxu0 0
      %450 = vmatprep.subr.bf16.mxu0 0
      %451 = vmatpush1.bf16.msra.mxu0 0
      %452 = vmatprep.mubr.bf16.mxu0 0
      %453 = vmatmul.mubr.bf16.gmra.mrb[0].mxu0 %v415
      %v454 = vpop.f32.mrb[0].mxu0
      %v455 = vadd.f32 %v386, %v454
      %v456 = vpop.f32.mrb[0].mxu0
      %v457 = vpop.f32.mrb[0].mxu0
      %v458 = vadd.f32 %v391, %v457
      %v459 = vpop.f32.mrb[0].mxu0
      %460 = vmatprep.mubr.bf16.mxu0 0
      %461 = vmatmul.mubr.bf16.gmra.mrb[0].mxu0 %v418
      %v462 = vpop.f32.mrb[0].mxu0
      %v463 = vadd.f32 %v396, %v462
      %v464 = vpop.f32.mrb[0].mxu0
      %v465 = vpop.f32.mrb[0].mxu0
      %v466 = vadd.f32 %v401, %v465
      %v467 = vpop.f32.mrb[0].mxu0
      %468 = vdwg.mxu0
      %v469 = vmax.f32 %v455, 0.0
      %v470 = vmax.f32 %v458, 0.0
      %v471 = vmax.f32 %v463, 0.0
      %v472 = vmax.f32 %v466, 0.0
      %474 = vset.pattern.permute.xlu0 0
      %475 = vperm.xlu0 %474, %v291
      %v476 = vpop.permute.xlu0 %475
      %479 = vset.pattern.permute.xlu0 0
      %480 = vperm.xlu0 %479, %v292
      %v481 = vpop.permute.xlu0 %480
      %484 = vset.pattern.permute.xlu0 0
      %485 = vperm.xlu0 %484, %v293
      %v486 = vpop.permute.xlu0 %485
      %489 = vset.pattern.permute.xlu0 0
      %490 = vperm.xlu0 %489, %v294
      %v491 = vpop.permute.xlu0 %490
      %v493 = vmul.f32 %v476, %v469
      %v494 = vmul.f32 %v481, %v470
      %v495 = vmul.f32 %v486, %v471
      %v496 = vmul.f32 %v491, %v472
      %v497 = vadd.f32 %v493, %v494
      %v498 = vadd.f32 %v497, %v495
      %v499 = vadd.f32 %v498, %v496
      %v500 = vrot.slane %v499, 4
      %v501 = vadd.f32 %v499, %v500
      %v502 = vrot.slane %v501, 2
      %v503 = vadd.f32 %v501, %v502
      %v504 = vrot.slane %v503, 1
      %v505 = vadd.f32 %v503, %v504
      %507 = vset.pattern.permute.xlu0 0
      %508 = vperm.xlu0 %507, %v295
      %v509 = vpop.permute.xlu0 %508
      %v511 = vlaneseq
      %v512 = vshrl.u32 %v511, 7
      %v513 = vsub.s32 0, %v512
      %v514 = vrot.slane %v509, %v513
      %v515 = vadd.f32 %v505, %v514
      %516 = vst [vmem:[%s273] sm:$0x1] %v515
      %p517 = scmp.lt.s32.totalorder %s20, 2
      %s518 = scalar_select %p517, %s20, 2
      %s519 = scalar_lea.vmem %s7, %s518
      // Predicated region
      $region49: #{mlp_forward.1} parent=47 // pred_check
        %p520 = pneg %p190
      $region50: #{mlp_forward.1} parent=47 // pred_check_branch
        %522 = sbr.rel (%p520) target = $region52
      $region51: #{mlp_forward.1} parent=47 // pred_region
        _
      $region52: #{mlp_forward.1} parent=47 // pred_fallthru
        _
    $region48: #{mlp_forward.1} parent=5 // pred_fallthru
      _
    %p523 = scmp.le.s32.totalorder 2, %s15
    // Predicated region
    $region53: #{mlp_forward.1} parent=5 // pred_check
      %p524 = pneg %p523
    $region54: #{mlp_forward.1} parent=5 // pred_check_branch
      %526 = sbr.rel (%p524) target = $region56
    $region55: #{mlp_forward.1} parent=5 // pred_region
      %s527 = ssub.s32 %s15, 2
      // Predicated region
      $region57: #{mlp_forward.1} parent=55 // pred_check
        %p528 = pneg %p196
      $region58: #{mlp_forward.1} parent=55 // pred_check_branch
        %530 = sbr.rel (%p528) target = $region60
      $region59: #{mlp_forward.1} parent=55 // pred_region
        %p531 = scmp.lt.s32.totalorder %s21, 2
        %s532 = scalar_select %p531, %s21, 2
        %s533 = scalar_lea.vmem %s7, %s532
      $region60: #{mlp_forward.1} parent=55 // pred_fallthru
        _
    $region56: #{mlp_forward.1} parent=5 // pred_fallthru
      _
  $region6: #{mlp_forward.1} parent=0 // loop_footer
    %s19 = sadd.s32 1, %s15
  $region7: #{mlp_forward.1} parent=0 // loop_footer_branch
    %14 = sbr.rel target = $region3
  $region8: #{mlp_forward.1} parent=0 // loop_exit
    _

</llo_original>
